<compile_context>
chip_gen: v6e
topology: v6e:2x2x1
jax: 0.10.0
libtpu: 0.0.40
codegen_flags: <defaults>
</compile_context>

<pallas_src>
import math

import jax
import jax.numpy as jnp
from jax.experimental import pallas as pl
from jax.experimental.pallas import tpu as pltpu


def _round_up(v, m):
    return ((v + m - 1) // m) * m


def _sublane_multiple(dtype):
    # vreg sublane packing: f32 -> 8 rows, bf16 -> 16, int8/fp8 -> 32.
    return max(8, 32 // jnp.dtype(dtype).itemsize)


def _divisor_tile(padded_dim, pref, unit):
    """Largest multiple of `unit` that divides `padded_dim` and is <= pref."""
    max_units = padded_dim // unit
    pref_units = max(1, min(int(pref) // unit, max_units))
    for d in range(pref_units, 0, -1):
        if max_units % d == 0:
            return d * unit
    return unit


def _vmem_capacity_bytes():
    try:
        cap = getattr(pltpu.get_tpu_info(), "vmem_capacity_bytes", None)
        if cap:
            return int(cap)
    except Exception:
        pass
    return 128 << 20  # conservative default (v5e/v6e)


def _tile_vmem_bytes(tm, tn, tk, in_isz, out_isz, has_bias, w_bufs):
    b = 2 * tm * tk * in_isz          # double-buffered x tiles
    b += w_bufs * tk * tn * in_isz    # buffered weight tiles
    b += 2 * tm * tn * out_isz        # double-buffered output tiles
    b += tm * tn * 4                  # f32 accumulator scratch
    if has_bias:
        b += 2 * tn * 4               # bias tile
    return b


def _mlp_kernel_bias(x_ref, w_ref, b_ref, o_ref, acc_ref):
    k = pl.program_id(2)

    @pl.when(k == 0)
    def _():
        acc_ref[...] = jnp.zeros_like(acc_ref)

    acc_ref[...] += jnp.dot(
        x_ref[...], w_ref[...], preferred_element_type=jnp.float32
    )

    @pl.when(k == pl.num_programs(2) - 1)
    def _():
        o_ref[...] = (acc_ref[...] + b_ref[...].astype(jnp.float32)).astype(
            o_ref.dtype
        )


def _mlp_kernel_nobias(x_ref, w_ref, o_ref, acc_ref):
    k = pl.program_id(2)

    @pl.when(k == 0)
    def _():
        acc_ref[...] = jnp.zeros_like(acc_ref)

    acc_ref[...] += jnp.dot(
        x_ref[...], w_ref[...], preferred_element_type=jnp.float32
    )

    @pl.when(k == pl.num_programs(2) - 1)
    def _():
        o_ref[...] = acc_ref[...].astype(o_ref.dtype)


def prepare_weight(weight, *, compute_dtype=jnp.bfloat16):
    """Hoistable, one-time weight preparation: cast to compute_dtype and pad
    K / N up to 128-multiples.  Tile choices never exceed the 128-rounded
    dims, so this padding is tile-independent and can be done once and reused
    across every forward call (no per-call extra HBM pass over the weight)."""
    K, N = weight.shape
    Kp, Np = _round_up(K, 128), _round_up(N, 128)
    w = weight.astype(compute_dtype)
    if (Kp, Np) != (K, N):
        w = jnp.pad(w, ((0, Kp - K), (0, Np - N)))
    return w


def mlp_layer(x, weight, bias=None, *, compute_dtype=jnp.bfloat16,
              out_dtype=jnp.float32, out_features=None,
              tm=None, tn=None, tk=None, w_buffers=2):
    """Pallas MLPLayer.forward: x @ weight (+ bias).

    compute_dtype: dtype fed to the MXU (default bfloat16 -> native MXU path,
      ~half the HBM traffic; pass jnp.float32 for f32-exact results).
      Accumulation is always float32.
    out_dtype: output dtype (default float32 to match the PyTorch module;
      pass bfloat16 when the consumer accepts it to halve writeback).
    weight may be raw (K, N) or pre-prepared via prepare_weight() (already
      cast + padded), in which case the per-call cast/pad is a no-op.
    out_features: true N when the weight is pre-padded (defaults to
      bias.shape[0] if bias is given, else weight.shape[1]).
    tm/tn/tk: optional tile-size overrides (rounded to hardware-legal values).
    w_buffers: >2 enables deeper pipelining on the weight stream.
    """
    assert x.ndim == 2 and weight.ndim == 2
    M, K = x.shape
    Kw, Nw = weight.shape
    assert K <= Kw, f"shape mismatch: x {x.shape} vs weight {weight.shape}"

    if out_features is None:
        out_features = int(bias.shape[0]) if bias is not None else Nw

    compute_dtype = jnp.dtype(compute_dtype)
    out_dtype = jnp.dtype(out_dtype)
    sub = _sublane_multiple(compute_dtype)

    Mp = _round_up(M, sub)
    Kp = _round_up(Kw, 128)
    Np = _round_up(Nw, 128)

    # Tile preferences: large tiles for big GEMMs (MXU-bound on all
    # generations); for small M (GEMV-like, weight-bandwidth-bound) keep a
    # single i block and widen N so the weight streams once with lane-dense
    # stores.
    small_m = Mp <= 256
    tm_pref = tm if tm is not None else (Mp if small_m else 1024)
    tn_pref = tn if tn is not None else (2048 if small_m else 1024)
    tk_pref = tk if tk is not None else (1024 if small_m else 512)
    tm = _divisor_tile(Mp, tm_pref, sub)
    tn = _divisor_tile(Np, tn_pref, 128)
    tk = _divisor_tile(Kp, tk_pref, 128)

    # Megacore (v7x) guard: ensure at least 2 parallel (i, j) blocks when the
    # problem allows it, otherwise the second TensorCore idles.
    if (Mp // tm) * (Np // tn) < 2:
        if Np >= 256 and (Np // 2) % 128 == 0:
            tn = Np // 2
        elif Mp >= 2 * sub and (Mp // 2) % sub == 0:
            tm = Mp // 2

    in_isz = compute_dtype.itemsize
    out_isz = out_dtype.itemsize
    has_bias = bias is not None

    # Per-generation VMEM budget (≈112 MiB on v5e/v6e, ≈48 MiB on v7x).
    vmem_budget = max(32 << 20, _vmem_capacity_bytes() - (16 << 20))
    while _tile_vmem_bytes(tm, tn, tk, in_isz, out_isz, has_bias,
                           max(2, w_buffers)) > vmem_budget:
        if tn >= max(tm, tk) and tn > 128:
            tn = _divisor_tile(Np, tn // 2, 128)
        elif tk >= tm and tk > 128:
            tk = _divisor_tile(Kp, tk // 2, 128)
        elif tm > sub:
            tm = _divisor_tile(Mp, tm // 2, sub)
        else:
            break

    grid = (Mp // tm, Np // tn, Kp // tk)
    gi, gj, gk = grid

    # Cast / pad are no-ops when the weight was pre-prepared and shapes align.
    x_c = x if x.dtype == compute_dtype else x.astype(compute_dtype)
    if (Mp, Kp) != (M, K):
        x_c = jnp.pad(x_c, ((0, Mp - M), (0, Kp - K)))
    w_c = weight if weight.dtype == compute_dtype else weight.astype(compute_dtype)
    if (Kp, Np) != (Kw, Nw):
        w_c = jnp.pad(w_c, ((0, Kp - Kw), (0, Np - Nw)))

    x_spec = pl.BlockSpec((tm, tk), lambda i, j, k: (i, k))
    if w_buffers > 2:
        w_spec = pl.BlockSpec((tk, tn), lambda i, j, k: (k, j),
                              pipeline_mode=pl.Buffered(w_buffers))
    else:
        w_spec = pl.BlockSpec((tk, tn), lambda i, j, k: (k, j))
    o_spec = pl.BlockSpec((tm, tn), lambda i, j, k: (i, j))
    scratch = [pltpu.VMEM((tm, tn), jnp.float32)]
    out_shape = jax.ShapeDtypeStruct((Mp, Np), out_dtype)

    # Account for re-streaming: x is read gj times, weight gi times.
    cost = pl.CostEstimate(
        flops=2 * Mp * Np * Kp,
        transcendentals=0,
        bytes_accessed=int(gj * Mp * Kp * in_isz + gi * Kp * Np * in_isz
                           + Mp * Np * out_isz),
    )
    compiler_params = pltpu.CompilerParams(
        dimension_semantics=("parallel", "parallel", "arbitrary"),
        vmem_limit_bytes=int(vmem_budget),
    )

    if has_bias:
        b_c = bias.astype(jnp.float32).reshape(1, -1)
        if b_c.shape[1] != Np:
            b_c = jnp.pad(b_c, ((0, 0), (0, Np - b_c.shape[1])))
        b_spec = pl.BlockSpec((1, tn), lambda i, j, k: (0, j))
        out = pl.pallas_call(
            _mlp_kernel_bias,
            out_shape=out_shape,
            grid_spec=pltpu.PrefetchScalarGridSpec(
                num_scalar_prefetch=0,
                grid=grid,
                in_specs=[x_spec, w_spec, b_spec],
                out_specs=o_spec,
                scratch_shapes=scratch,
            ),
            compiler_params=compiler_params,
            cost_estimate=cost,
        )(x_c, w_c, b_c)
    else:
        out = pl.pallas_call(
            _mlp_kernel_nobias,
            out_shape=out_shape,
            grid_spec=pltpu.PrefetchScalarGridSpec(
                num_scalar_prefetch=0,
                grid=grid,
                in_specs=[x_spec, w_spec],
                out_specs=o_spec,
                scratch_shapes=scratch,
            ),
            compiler_params=compiler_params,
            cost_estimate=cost,
        )(x_c, w_c)

    if (Mp, Np) != (M, out_features):
        out = out[:M, :out_features]
    return out


def init_mlp_params(key, in_features, out_features, bias=True):
    """Mirror MLPLayer.reset_parameters: weight, bias ~ Normal(mean=-stdv,
    std=stdv) with stdv = 1/sqrt(out_features)."""
    stdv = 1.0 / math.sqrt(out_features)
    kw, kb = jax.random.split(key)
    weight = (jax.random.normal(kw, (in_features, out_features), jnp.float32)
              * stdv - stdv)
    b = None
    if bias:
        b = jax.random.normal(kb, (out_features,), jnp.float32) * stdv - stdv
    return weight, b
    # TODO(synk): self.weight_normalization (ONINorm) is constructed in
    # __init__ but never used in forward(), so it is intentionally omitted.


if __name__ == "__main__":
    key = jax.random.PRNGKey(0)
    k1, k2, k3, k4, k5, k6 = jax.random.split(key, 6)

    # --- Test 1: module-sized shapes (batch=8, in=32, out=64), bias,
    #             default bf16 compute, hoisted weight prep -----------------
    batch, in_features, out_features = 8, 32, 64
    x = jax.random.normal(k1, (batch, in_features), jnp.float32)
    weight, bias = init_mlp_params(k2, in_features, out_features, bias=True)
    w_prep = jax.block_until_ready(prepare_weight(weight))   # done once
    out = jax.block_until_ready(
        mlp_layer(x, w_prep, bias, out_features=out_features))
    ref_bf16 = (jnp.dot(x.astype(jnp.bfloat16), weight.astype(jnp.bfloat16),
                        preferred_element_type=jnp.float32) + bias)
    ref_f32 = x @ weight + bias
    assert out.shape == (batch, out_features)
    assert jnp.allclose(out, ref_bf16, atol=2e-3, rtol=2e-3)
    assert jnp.allclose(out, ref_f32, atol=5e-2, rtol=5e-2)

    # --- Test 2: multi-tile grid (2x2x2) with K accumulation, f32 compute
    #             path, no bias, explicit small tiles -----------------------
    M2, K2, N2 = 16, 256, 256
    x2 = jax.random.normal(k3, (M2, K2), jnp.float32)
    w2, _ = init_mlp_params(k4, K2, N2, bias=False)
    out2 = jax.block_until_ready(
        mlp_layer(x2, w2, None, compute_dtype=jnp.float32,
                  tm=8, tn=128, tk=128))
    ref2 = jnp.dot(x2, w2, precision=jax.lax.Precision.HIGHEST)
    assert out2.shape == (M2, N2)
    assert jnp.allclose(out2, ref2, atol=2e-3, rtol=2e-3)

    # --- Test 3: small-M (GEMV-like) default path + megacore N split -------
    M3, K3, N3 = 16, 256, 512
    x3 = jax.random.normal(k5, (M3, K3), jnp.float32)
    w3, b3 = init_mlp_params(k6, K3, N3, bias=True)
    out3 = jax.block_until_ready(mlp_layer(x3, prepare_weight(w3), b3))
    ref3 = (jnp.dot(x3.astype(jnp.bfloat16), w3.astype(jnp.bfloat16),
                    preferred_element_type=jnp.float32) + b3)
    assert out3.shape == (M3, N3)
    assert jnp.allclose(out3, ref3, atol=2e-3, rtol=2e-3)

    print("KERNEL_OK")
</pallas_src>

<mosaic_0001>
module attributes {stable_mosaic.version = 11 : i64} {
  func.func @_mlp_kernel_bias(%arg0: i32, %arg1: i32, %arg2: i32, %arg3: memref<16x128xbf16, #tpu.memory_space<vmem>>, %arg4: memref<128x128xbf16, #tpu.memory_space<vmem>>, %arg5: memref<1x128xf32, #tpu.memory_space<vmem>>, %arg6: memref<16x128xf32, #tpu.memory_space<vmem>>, %arg7: memref<16x128xf32, #tpu.memory_space<vmem>>) attributes {dimension_semantics = [#tpu.dimension_semantics<parallel>, #tpu.dimension_semantics<parallel>, #tpu.dimension_semantics<arbitrary>], iteration_bounds = array<i64: 1, 1, 1>, scalar_prefetch = 0 : i64, scratch_operands = 1 : i64, tpu.core_type = #tpu.core_type<tc>, window_params = [{transform_indices = @transform_0, window_bounds = array<i64: 16, 128>}, {transform_indices = @transform_1, window_bounds = array<i64: 128, 128>}, {transform_indices = @transform_2, window_bounds = array<i64: 1, 128>}, {transform_indices = @transform_3, window_bounds = array<i64: 16, 128>}]} {
    %c0_i32 = arith.constant 0 : i32
    %0 = arith.cmpi eq, %arg2, %c0_i32 : i32
    %1 = arith.extui %0 : i1 to i32
    %c0_i32_0 = arith.constant 0 : i32
    %2 = arith.cmpi ne, %1, %c0_i32_0 : i32
    scf.if %2 {
      %cst_10 = arith.constant 0.000000e+00 : f32
      %12 = vector.broadcast %cst_10 : f32 to vector<16x128xf32>
      %c0_11 = arith.constant 0 : index
      %c0_12 = arith.constant 0 : index
      %13 = vector.load %arg7[%c0_11, %c0_12] : memref<16x128xf32, #tpu.memory_space<vmem>>, vector<16x128xf32>
      tpu.vector_store %arg7[%c0_11, %c0_12], %12 {strides = array<i32>} : memref<16x128xf32, #tpu.memory_space<vmem>>, vector<16x128xf32>,
    } else {
    }
    %c0 = arith.constant 0 : index
    %c0_1 = arith.constant 0 : index
    %3 = vector.load %arg7[%c0, %c0_1] : memref<16x128xf32, #tpu.memory_space<vmem>>, vector<16x128xf32>
    %c0_2 = arith.constant 0 : index
    %c0_3 = arith.constant 0 : index
    %4 = vector.load %arg3[%c0_2, %c0_3] : memref<16x128xbf16, #tpu.memory_space<vmem>>, vector<16x128xbf16>
    %c0_4 = arith.constant 0 : index
    %c0_5 = arith.constant 0 : index
    %5 = vector.load %arg4[%c0_4, %c0_5] : memref<128x128xbf16, #tpu.memory_space<vmem>>, vector<128x128xbf16>
    %cst = arith.constant dense<0.000000e+00> : vector<16x128xf32>
    %6 = tpu.matmul %4, %5, %cst {dimension_numbers = #tpu.dot_dimension_numbers<[1], [0], [0], [1], [0, 0, 1, 1], [], []>} : vector<16x128xbf16>, vector<128x128xbf16>, vector<16x128xf32> -> vector<16x128xf32>
    %7 = arith.addf %3, %6 : vector<16x128xf32>
    %c0_6 = arith.constant 0 : index
    %c0_7 = arith.constant 0 : index
    %8 = vector.load %arg7[%c0_6, %c0_7] : memref<16x128xf32, #tpu.memory_space<vmem>>, vector<16x128xf32>
    tpu.vector_store %arg7[%c0_6, %c0_7], %7 {strides = array<i32>} : memref<16x128xf32, #tpu.memory_space<vmem>>, vector<16x128xf32>,
    %c0_i32_8 = arith.constant 0 : i32
    %9 = arith.cmpi eq, %arg2, %c0_i32_8 : i32
    %10 = arith.extui %9 : i1 to i32
    %c0_i32_9 = arith.constant 0 : i32
    %11 = arith.cmpi ne, %10, %c0_i32_9 : i32
    scf.if %11 {
      %c0_10 = arith.constant 0 : index
      %c0_11 = arith.constant 0 : index
      %12 = vector.load %arg7[%c0_10, %c0_11] : memref<16x128xf32, #tpu.memory_space<vmem>>, vector<16x128xf32>
      %c0_12 = arith.constant 0 : index
      %c0_13 = arith.constant 0 : index
      %13 = vector.load %arg5[%c0_12, %c0_13] : memref<1x128xf32, #tpu.memory_space<vmem>>, vector<1x128xf32>
      %14 = vector.broadcast %13 : vector<1x128xf32> to vector<16x128xf32>
      %15 = arith.addf %12, %14 : vector<16x128xf32>
      %c0_14 = arith.constant 0 : index
      %c0_15 = arith.constant 0 : index
      %16 = vector.load %arg6[%c0_14, %c0_15] : memref<16x128xf32, #tpu.memory_space<vmem>>, vector<16x128xf32>
      tpu.vector_store %arg6[%c0_14, %c0_15], %15 {strides = array<i32>} : memref<16x128xf32, #tpu.memory_space<vmem>>, vector<16x128xf32>,
    } else {
    }
    return
  }
  func.func @transform_0(%arg0: i32, %arg1: i32, %arg2: i32) -> (i32, i32) {
    %c0_i32 = arith.constant 0 : i32
    return %arg0, %arg2 : i32, i32
  }
  func.func @transform_1(%arg0: i32, %arg1: i32, %arg2: i32) -> (i32, i32) {
    %c0_i32 = arith.constant 0 : i32
    return %arg2, %arg1 : i32, i32
  }
  func.func @transform_2(%arg0: i32, %arg1: i32, %arg2: i32) -> (i32, i32) {
    %c0_i32 = arith.constant 0 : i32
    %c0_i32_0 = arith.constant 0 : i32
    return %c0_i32, %arg1 : i32, i32
  }
  func.func @transform_3(%arg0: i32, %arg1: i32, %arg2: i32) -> (i32, i32) {
    %c0_i32 = arith.constant 0 : i32
    return %arg0, %arg1 : i32, i32
  }
}

</mosaic_0001>

<llo_original>
// kernel: tpu_custom_call.1
$region0: #{tpu_custom_call.1}
  #allocation0 [shape = 'u32[]', space=smem, size = 0x4, offset = 0x4, fixed_abs, tag = 'smem constant byte address 0x4 - core index']
  #allocation1 [shape = 'u32[144,128]{1,0:T(1,128)}', space=vmem, size = 0x12000, scoped, tag = 'internal scratch']
  #allocation2 [shape = 'f32[16,128]{1,0:T(8,128)}', space=vmem, size = 0x2000, scoped, tag = 'scratch operand']
  %s0 = inlined_call_operand.hbm [shape: bf16[16,128], index: 0, kind: input, shape index: {}]
  %s1 = inlined_call_operand.hbm [shape: bf16[128,128], index: 1, kind: input, shape index: {}]
  %s2 = inlined_call_operand.vmem [shape: f32[1,128], index: 2, kind: input, shape index: {}]
  %s3 = inlined_call_operand.hbm [shape: f32[16,128], index: 3, kind: output, shape index: {}]
  %s4 = sld [smem:[#allocation0]]
  $region38: #{tpu_custom_call.1} parent=0
    _
  %s6 = ssub.s32 1, %s4
  %s7 = scalar_select 0, %s6, %s4
  $region1: #{tpu_custom_call.1} parent=0
    #allocation3 [shape = 'u8[4096]{0}', space=vmem, size = 0x1000, scoped, tag = 'input window, operand 0, single buffered']
    #allocation4 [shape = 's32[1]{0}', space=sflag, size = 0x4, scoped, tag = 'scoped memory for tpu_custom_call.1']
    #allocation5 [shape = 's32[1]{0}', space=sflag, size = 0x4, scoped, tag = 'scoped memory for tpu_custom_call.1']
    #allocation6 [shape = 'u8[32768]{0}', space=vmem, size = 0x8000, scoped, tag = 'input window, operand 1, single buffered']
    #allocation7 [shape = 's32[1]{0}', space=sflag, size = 0x4, scoped, tag = 'scoped memory for tpu_custom_call.1']
    #allocation8 [shape = 'u8[8192]{0}', space=vmem, size = 0x2000, scoped, tag = 'output window, operand 0, single buffered']
    %8 = vsyncpa [#allocation4], 0
    %9 = vsyncpa [#allocation7], 0
    %10 = vsyncpa [#allocation5], 0
    // Predicated region
    $region2: #{tpu_custom_call.1} parent=1 // pred_check
      _
    $region3: #{tpu_custom_call.1} parent=1 // pred_check_branch
      %12 = sbr.rel (0) target = $region5
    $region4: #{tpu_custom_call.1} parent=1 // pred_region
      %s14 = ssub.s32 128, 128
      %15 = vsyncadd [#allocation4], %s14
      %s16 = sshll.u32 [#allocation3], 4
      %s17 = int_to_ptr.vmem [resolvable:$true] %s16
      %22 = dma.hbm_to_vmem [thread:$0]  %s0, 128, %s17, [#allocation4], 64, 64, 4
    $region5: #{tpu_custom_call.1} parent=1 // pred_fallthru
      _
    // Predicated region
    $region6: #{tpu_custom_call.1} parent=1 // pred_check
      _
    $region7: #{tpu_custom_call.1} parent=1 // pred_check_branch
      %24 = sbr.rel (0) target = $region9
    $region8: #{tpu_custom_call.1} parent=1 // pred_region
      %s26 = ssub.s32 1024, 1024
      %27 = vsyncadd [#allocation7], %s26
      %s28 = sshll.u32 [#allocation6], 4
      %s29 = int_to_ptr.vmem [resolvable:$true] %s28
      %34 = dma.hbm_to_vmem [thread:$0]  %s1, 1024, %s29, [#allocation7], 64, 64, 4
    $region9: #{tpu_custom_call.1} parent=1 // pred_fallthru
      _
    // Predicated region
    $region10: #{tpu_custom_call.1} parent=1 // pred_check
      _
    $region11: #{tpu_custom_call.1} parent=1 // pred_check_branch
      %36 = sbr.rel (0) target = $region13
    $region12: #{tpu_custom_call.1} parent=1 // pred_region
      _
    $region13: #{tpu_custom_call.1} parent=1 // pred_fallthru
      _
    // Predicated region
    $region14: #{tpu_custom_call.1} parent=1 // pred_check
      _
    $region15: #{tpu_custom_call.1} parent=1 // pred_check_branch
      %38 = sbr.rel (0) target = $region17
    $region16: #{tpu_custom_call.1} parent=1 // pred_region
      %39 = dma.done [#allocation4], 128
    $region17: #{tpu_custom_call.1} parent=1 // pred_fallthru
      _
    // Predicated region
    $region18: #{tpu_custom_call.1} parent=1 // pred_check
      _
    $region19: #{tpu_custom_call.1} parent=1 // pred_check_branch
      %41 = sbr.rel (0) target = $region21
    $region20: #{tpu_custom_call.1} parent=1 // pred_region
      %42 = dma.done [#allocation7], 1024
    $region21: #{tpu_custom_call.1} parent=1 // pred_fallthru
      _
    %p44 = scmp.eq.s32.totalorder 0, 0
    // Predicated region
    $region22: #{tpu_custom_call.1} parent=1 // pred_check
      %p45 = pneg %p44
    $region23: #{tpu_custom_call.1} parent=1 // pred_check_branch
      %47 = sbr.rel (%p45) target = $region25
    $region24: #{tpu_custom_call.1} parent=1 // pred_region
      %48 = vst [vmem:[#allocation2] sm:$0xff] 0.0
      %49 = vst [vmem:[#allocation2 + $0x8] sm:$0xff] 0.0
    $region25: #{tpu_custom_call.1} parent=1 // pred_fallthru
      _
    %v50 = vld [vmem:[#allocation2] sm:$0xff]
    %v51 = vld [vmem:[#allocation2 + $0x8] sm:$0xff]
    %v52 = vld [vmem:[#allocation3] sm:$0xf]
    %v53 = vld [vmem:[#allocation3 + $0x4] sm:$0xf]
    %v54 = vld [vmem:[#allocation6] sm:$0xf]
    %v55 = vld [vmem:[#allocation6 + $0x4] sm:$0xf]
    %v56 = vld [vmem:[#allocation6 + $0x8] sm:$0xf]
    %v57 = vld [vmem:[#allocation6 + $0xc] sm:$0xf]
    %v58 = vld [vmem:[#allocation6 + $0x10] sm:$0xf]
    %v59 = vld [vmem:[#allocation6 + $0x14] sm:$0xf]
    %v60 = vld [vmem:[#allocation6 + $0x18] sm:$0xf]
    %v61 = vld [vmem:[#allocation6 + $0x1c] sm:$0xf]
    %v62 = vld [vmem:[#allocation6 + $0x20] sm:$0xf]
    %v63 = vld [vmem:[#allocation6 + $0x24] sm:$0xf]
    %v64 = vld [vmem:[#allocation6 + $0x28] sm:$0xf]
    %v65 = vld [vmem:[#allocation6 + $0x2c] sm:$0xf]
    %v66 = vld [vmem:[#allocation6 + $0x30] sm:$0xf]
    %v67 = vld [vmem:[#allocation6 + $0x34] sm:$0xf]
    %v68 = vld [vmem:[#allocation6 + $0x38] sm:$0xf]
    %v69 = vld [vmem:[#allocation6 + $0x3c] sm:$0xf]
    %v72 = vunpack.c.l.b16 %v52
    %v73 = vunpack.c.l.b16 %v53
    %v74 = vpack.c.b16 %v73, %v72
    %v92 = vunpack.c.l.b16 %v54
    %v93 = vunpack.c.l.b16 %v55
    %v94 = vunpack.c.l.b16 %v56
    %v95 = vunpack.c.l.b16 %v57
    %v96 = vunpack.c.l.b16 %v58
    %v97 = vunpack.c.l.b16 %v59
    %v98 = vunpack.c.l.b16 %v60
    %v99 = vunpack.c.l.b16 %v61
    %v100 = vunpack.c.l.b16 %v62
    %v101 = vunpack.c.l.b16 %v63
    %v102 = vunpack.c.l.b16 %v64
    %v103 = vunpack.c.l.b16 %v65
    %v104 = vunpack.c.l.b16 %v66
    %v105 = vunpack.c.l.b16 %v67
    %v106 = vunpack.c.l.b16 %v68
    %v107 = vunpack.c.l.b16 %v69
    %v108 = vpack.c.b16 %v93, %v92
    %v109 = vpack.c.b16 %v95, %v94
    %v110 = vpack.c.b16 %v97, %v96
    %v111 = vpack.c.b16 %v99, %v98
    %v112 = vpack.c.b16 %v101, %v100
    %v113 = vpack.c.b16 %v103, %v102
    %v114 = vpack.c.b16 %v105, %v104
    %v115 = vpack.c.b16 %v107, %v106
    %124 = vmatprep.subr.bf16.mxu0 0
    %125 = vmatpush1.bf16.msra.mxu0 %v115
    %126 = vmatprep.subr.bf16.mxu0 0
    %127 = vmatpush1.bf16.msra.mxu0 %v114
    %128 = vmatprep.subr.bf16.mxu0 0
    %129 = vmatpush1.bf16.msra.mxu0 %v113
    %130 = vmatprep.subr.bf16.mxu0 0
    %131 = vmatpush1.bf16.msra.mxu0 %v112
    %132 = vmatprep.subr.bf16.mxu0 0
    %133 = vmatpush1.bf16.msra.mxu0 %v111
    %134 = vmatprep.subr.bf16.mxu0 0
    %135 = vmatpush1.bf16.msra.mxu0 %v110
    %136 = vmatprep.subr.bf16.mxu0 0
    %137 = vmatpush1.bf16.msra.mxu0 %v109
    %138 = vmatprep.subr.bf16.mxu0 0
    %139 = vmatpush1.bf16.msra.mxu0 %v108
    %140 = vmatprep.subr.bf16.mxu0 0
    %141 = vmatpush2.bf16.msra.mxu0 0
    %142 = vmatprep.subr.bf16.mxu0 0
    %143 = vmatpush2.bf16.msra.mxu0 0
    %144 = vmatprep.subr.bf16.mxu0 0
    %145 = vmatpush2.bf16.msra.mxu0 0
    %146 = vmatprep.subr.bf16.mxu0 0
    %147 = vmatpush2.bf16.msra.mxu0 0
    %148 = vmatprep.subr.bf16.mxu0 0
    %149 = vmatpush2.bf16.msra.mxu0 0
    %150 = vmatprep.subr.bf16.mxu0 0
    %151 = vmatpush2.bf16.msra.mxu0 0
    %152 = vmatprep.subr.bf16.mxu0 0
    %153 = vmatpush2.bf16.msra.mxu0 0
    %154 = vmatprep.subr.bf16.mxu0 0
    %155 = vmatpush2.bf16.msra.mxu0 0
    %156 = vmatprep.mubr.bf16.mxu0 0
    %157 = vmatmul.mubr.bf16.gmra.mxu0 %v74
    %v158 = vpop.f32.mrf.mxu0
    %v159 = vadd.f32 0.0, %v158
    %v160 = vpop.f32.mrf.mxu0
    %v161 = vpop.f32.mrf.mxu0
    %v162 = vadd.f32 0.0, %v161
    %v163 = vpop.f32.mrf.mxu0
    %164 = vdwg.mxu0
    %v165 = vadd.f32 %v50, %v159
    %v166 = vadd.f32 %v51, %v162
    %167 = vst [vmem:[#allocation2] sm:$0xff] %v165
    %168 = vst [vmem:[#allocation2 + $0x8] sm:$0xff] %v166
    // Predicated region
    $region26: #{tpu_custom_call.1} parent=1 // pred_check
      %p169 = pneg %p44
    $region27: #{tpu_custom_call.1} parent=1 // pred_check_branch
      %171 = sbr.rel (%p169) target = $region29
    $region28: #{tpu_custom_call.1} parent=1 // pred_region
      %v172 = vld [vmem:[#allocation2] sm:$0xff]
      %v173 = vld [vmem:[#allocation2 + $0x8] sm:$0xff]
      %v174 = vld [vmem:[%s2] sm:$0x1]
      %v176 = vlaneseq
      %v177 = vshrl.u32 %v176, 7
      %v178 = vsub.s32 0, %v177
      %v179 = vrot.slane %v174, %v178
      %v181 = vadd.f32 %v172, %v179
      %v182 = vadd.f32 %v173, %v179
      %183 = vst [vmem:[#allocation8] sm:$0xff] %v181
      %184 = vst [vmem:[#allocation8 + $0x8] sm:$0xff] %v182
    $region29: #{tpu_custom_call.1} parent=1 // pred_fallthru
      _
    // Predicated region
    $region30: #{tpu_custom_call.1} parent=1 // pred_check
      _
    $region31: #{tpu_custom_call.1} parent=1 // pred_check_branch
      %186 = sbr.rel (0) target = $region33
    $region32: #{tpu_custom_call.1} parent=1 // pred_region
      %s188 = ssub.s32 256, 256
      %189 = vsyncadd [#allocation5], %s188
      %s190 = sshll.u32 [#allocation8], 4
      %s191 = int_to_ptr.vmem [resolvable:$true] %s190
      %196 = dma.vmem_to_hbm [thread:$0]  %s191, 256, %s3, [#allocation5], 128, 128, 8
    $region33: #{tpu_custom_call.1} parent=1 // pred_fallthru
      _
    // Predicated region
    $region34: #{tpu_custom_call.1} parent=1 // pred_check
      _
    $region35: #{tpu_custom_call.1} parent=1 // pred_check_branch
      %198 = sbr.rel (0) target = $region37
    $region36: #{tpu_custom_call.1} parent=1 // pred_region
      %199 = dma.done [#allocation5], 256
    $region37: #{tpu_custom_call.1} parent=1 // pred_fallthru
      _
    %200 = vsyncpa [#allocation4], 1
    %201 = vsyncpa [#allocation7], 1
    %202 = vsyncpa [#allocation5], 1

</llo_original>
